<compile_context>
chip_gen: v7x
topology: tpu7x:2x2x1
jax: 0.10.0
libtpu: 0.0.40
codegen_flags: <defaults>
</compile_context>

<pallas_src>
import jax
import jax.numpy as jnp
from jax import lax
from jax.experimental import pallas as pl
from jax.experimental.pallas import tpu as pltpu


def _round_up(x, m):
    return (x + m - 1) // m * m


def _vmem_capacity_bytes():
    try:
        return int(pltpu.get_tpu_info().vmem_capacity_bytes)
    except Exception:
        return 64 * 1024 * 1024  # conservative default (v7x per-TC VMEM)


# --------------------------------------------------------------------------- #
# Fast path: one-hot MXU gather over a VMEM-resident (bf16-split) table.
# --------------------------------------------------------------------------- #
def _onehot_gather_kernel(ids_ref, tab_ref, out_ref):
    """out_ref[j, :] = table[ids[j], :] via a one-hot matmul on the MXU."""
    tm = out_ref.shape[0]
    v = tab_ref.shape[1]
    ids = ids_ref[...]                                   # (tm, 1) int32
    iota = lax.broadcasted_iota(jnp.int32, (tm, v), 1)   # (tm, V)
    onehot = (ids == iota).astype(jnp.bfloat16)          # exact 0.0 / 1.0
    # Three native bf16 MXU passes against the exact bf16 split of the f32 table;
    # (h0 + h1) + h2 reconstructs the f32 rows bit-exactly.
    acc = jnp.dot(onehot, tab_ref[0], preferred_element_type=jnp.float32)
    acc = acc + jnp.dot(onehot, tab_ref[1], preferred_element_type=jnp.float32)
    acc = acc + jnp.dot(onehot, tab_ref[2], preferred_element_type=jnp.float32)
    out_ref[...] = acc.astype(out_ref.dtype)


def _split_table_exact_bf16(table_f32):
    """Split an f32 table into three bf16 planes with t0 + t1 + t2 == table exactly,
    so the one-hot bf16 matmul gather is bit-exact regardless of matmul precision."""
    t0 = table_f32.astype(jnp.bfloat16)
    r1 = table_f32 - t0.astype(jnp.float32)
    t1 = r1.astype(jnp.bfloat16)
    r2 = r1 - t1.astype(jnp.float32)
    t2 = r2.astype(jnp.bfloat16)
    return jnp.stack([t0, t1, t2])                       # (3, V, D) bf16


# --------------------------------------------------------------------------- #
# Fallback: large-vocab manual batched DMA gather straight from HBM.
# --------------------------------------------------------------------------- #
_FB_ROWS = 8  # rows in flight per DMA slot -> one coalesced (8, D) store per group


def _dma_gather_kernel(ids_smem, table_hbm, out_ref, buf, sems):
    tm = out_ref.shape[0]
    base = pl.program_id(0) * tm
    n_groups = tm // _FB_ROWS                            # static

    def start_group(g, slot):
        for r in range(_FB_ROWS):                        # _FB_ROWS DMAs in flight
            row = ids_smem[base + g * _FB_ROWS + r]
            pltpu.make_async_copy(
                table_hbm.at[pl.ds(row, 1), :],
                buf.at[slot, pl.ds(r, 1), :],
                sems.at[slot, r],
            ).start()

    def wait_group(slot):
        for r in range(_FB_ROWS):
            pltpu.make_async_copy(
                table_hbm.at[pl.ds(0, 1), :],            # same-shape descriptor for wait
                buf.at[slot, pl.ds(r, 1), :],
                sems.at[slot, r],
            ).wait()

    start_group(0, 0)

    def body(g, carry):
        slot = g % 2

        @pl.when(g + 1 < n_groups)
        def _():                                         # prefetch next group, other slot
            start_group(g + 1, 1 - slot)

        wait_group(slot)
        off = pl.multiple_of(g * _FB_ROWS, _FB_ROWS)
        out_ref[pl.ds(off, _FB_ROWS), :] = buf[slot]     # one aligned (8, D) store
        return carry

    lax.fori_loop(0, n_groups, body, 0)


# --------------------------------------------------------------------------- #
# Wrapper
# --------------------------------------------------------------------------- #
def content_embedding_lookup(ids, table, *, tokens_per_tile=512,
                             max_onehot_vocab=2048,
                             vmem_table_budget_bytes=None):
    """Pallas equivalent of `self.embeddings[x]` (ContentEmbedding.forward).

    ids:   (B, S) integer token ids
    table: (V, D) float32 embedding table
    returns (B, S, D) float32
    """
    B, S = ids.shape
    V, D = table.shape
    N = B * S

    vmem_cap = _vmem_capacity_bytes()
    headroom = 16 * 1024 * 1024
    table_budget = (vmem_table_budget_bytes if vmem_table_budget_bytes is not None
                    else max(8 * 1024 * 1024, vmem_cap - headroom))

    # PyTorch indexing would raise on out-of-range ids; here they are clamped so no
    # out-of-bounds row can ever reach the kernel / data-dependent DMA.
    flat = jnp.clip(ids.reshape(-1).astype(jnp.int32), 0, V - 1)

    # Token-tile size: multiple of 8 sublanes, capped by the (padded) token count.
    tm = max(8, min(tokens_per_tile, _round_up(N, 8)))
    tm = _round_up(tm, 8)
    n_pad = _round_up(N, tm)
    if n_pad != N:
        flat = jnp.concatenate([flat, jnp.zeros((n_pad - N,), jnp.int32)])

    split_bytes = 3 * V * D * 2  # three bf16 planes resident in VMEM (single copy)

    if V <= max_onehot_vocab and split_bytes <= table_budget:
        # ---- Fast path: one-hot MXU gather, table resident in VMEM. -------------
        tab3 = _split_table_exact_bf16(table.astype(jnp.float32))
        ids2d = flat.reshape(n_pad, 1)

        vmem_need = (split_bytes              # resident split table (single copy)
                     + 2 * tm * 4             # ids double buffers
                     + 2 * tm * D * 4         # output double buffers
                     + tm * V * 4             # one-hot / matmul temporaries
                     + headroom)
        cost = pl.CostEstimate(
            flops=2 * 3 * n_pad * V * D,
            transcendentals=0,
            bytes_accessed=split_bytes + n_pad * 4 + n_pad * D * 4,
        )

        out_flat = pl.pallas_call(
            _onehot_gather_kernel,
            out_shape=jax.ShapeDtypeStruct((n_pad, D), jnp.float32),
            grid=(n_pad // tm,),
            in_specs=[
                pl.BlockSpec((tm, 1), lambda i: (i, 0)),             # per-tile ids
                pl.BlockSpec(memory_space=pltpu.MemorySpace.VMEM),   # resident table
            ],
            out_specs=pl.BlockSpec((tm, D), lambda i: (i, 0)),
            compiler_params=pltpu.CompilerParams(
                # TODO(synk): pltpu.CORE_PARALLEL on v7x for true dual-TC sharding.
                dimension_semantics=("parallel",),
                vmem_limit_bytes=int(min(vmem_cap, max(32 * 1024 * 1024, vmem_need))),
            ),
            cost_estimate=cost,
        )(ids2d, tab3)
    else:
        # ---- Fallback: manual batched, double-buffered DMA gather from HBM. -----
        table_f32 = table.astype(jnp.float32)
        cost = pl.CostEstimate(
            flops=0,
            transcendentals=0,
            bytes_accessed=n_pad * 4 + 2 * n_pad * D * 4,
        )
        out_flat = pl.pallas_call(
            _dma_gather_kernel,
            out_shape=jax.ShapeDtypeStruct((n_pad, D), jnp.float32),
            grid_spec=pltpu.PrefetchScalarGridSpec(
                num_scalar_prefetch=1,                              # flat ids -> SMEM
                grid=(n_pad // tm,),
                in_specs=[pl.BlockSpec(memory_space=pl.ANY)],       # table stays in HBM
                out_specs=pl.BlockSpec((tm, D), lambda i, ids: (i, 0)),
                scratch_shapes=[
                    pltpu.VMEM((2, _FB_ROWS, D), jnp.float32),      # staging slots
                    pltpu.SemaphoreType.DMA((2, _FB_ROWS)),
                ],
            ),
            compiler_params=pltpu.CompilerParams(
                dimension_semantics=("arbitrary",),
            ),
            cost_estimate=cost,
        )(flat, table_f32)

    return out_flat[:N].reshape(B, S, D)


def build_embedding_table(key, vocab_size, d_model, pad_token_id, mask_token_id):
    """Deterministic synthetic stand-in for the CSV/tokenizer-driven init."""
    k_tab, k_mask = jax.random.split(key, 2)
    # np.random.random(...) * 2 - 1  ->  uniform in [-1, 1)
    table = jax.random.uniform(k_tab, (vocab_size, d_model), jnp.float32, -1.0, 1.0)
    # TODO(synk): rows for "known" tokenizer ids come from the embeddings CSV in the
    # original module; no file I/O here, so those rows keep their uniform init.
    table = table.at[pad_token_id].set(jnp.zeros((d_model,), jnp.float32))
    table = table.at[mask_token_id].set(
        jax.random.uniform(k_mask, (d_model,), jnp.float32, -1.0, 1.0)
    )
    return table


if __name__ == "__main__":
    VOCAB, D_MODEL = 64, 32
    BATCH, SEQ = 2, 8
    PAD_ID, MASK_ID = 0, 1

    key = jax.random.PRNGKey(0)
    k_table, k_ids, k_ids2 = jax.random.split(key, 3)

    table = build_embedding_table(k_table, VOCAB, D_MODEL, PAD_ID, MASK_ID)

    # Case 1: module-sized input on the one-hot MXU fast path.
    x = jax.random.randint(k_ids, (BATCH, SEQ), 0, VOCAB, dtype=jnp.int32)
    out = jax.block_until_ready(content_embedding_lookup(x, table))
    ref = table[x]  # == torch `self.embeddings[x]`
    assert out.shape == (BATCH, SEQ, D_MODEL), out.shape
    # Gather is an exact copy -> bit-exact equality, not allclose.
    assert jnp.array_equal(out, ref), "one-hot MXU gather mismatch vs reference (small)"

    # Case 2: larger input exercising a multi-tile grid on the fast path.
    x2 = jax.random.randint(k_ids2, (4, 128), 0, VOCAB, dtype=jnp.int32)
    out2 = jax.block_until_ready(
        content_embedding_lookup(x2, table, tokens_per_tile=128))
    assert jnp.array_equal(out2, table[x2]), "one-hot MXU gather mismatch (tiled)"

    # Case 3: force the large-vocab manual-DMA fallback and validate it too.
    out3 = jax.block_until_ready(
        content_embedding_lookup(x, table, max_onehot_vocab=0))
    assert jnp.array_equal(out3, ref), "DMA-gather fallback mismatch vs reference"

    print("KERNEL_OK")
</pallas_src>

<mosaic_0001>
module attributes {stable_mosaic.version = 11 : i64} {
  func.func @_onehot_gather_kernel(%arg0: i32, %arg1: memref<16x1xi32, #tpu.memory_space<vmem>>, %arg2: memref<3x64x32xbf16, #tpu.memory_space<vmem>>, %arg3: memref<16x32xf32, #tpu.memory_space<vmem>>) attributes {dimension_semantics = [#tpu.dimension_semantics<parallel>], iteration_bounds = array<i64: 1>, scalar_prefetch = 0 : i64, scratch_operands = 0 : i64, tpu.core_type = #tpu.core_type<tc>, window_params = [{transform_indices = @transform_0, window_bounds = array<i64: 16, 1>}, {pipeline_mode = #tpu.pipeline_mode<synchronous>, transform_indices = @transform_1, window_bounds = array<i64: 3, 64, 32>}, {transform_indices = @transform_2, window_bounds = array<i64: 16, 32>}]} {
    %c0 = arith.constant 0 : index
    %c0_0 = arith.constant 0 : index
    %0 = vector.load %arg1[%c0, %c0_0] : memref<16x1xi32, #tpu.memory_space<vmem>>, vector<16x1xi32>
    %1 = tpu.iota {dimensions = array<i32: 1>} : vector<16x64xi32>
    %2 = vector.broadcast %0 : vector<16x1xi32> to vector<16x64xi32>
    %3 = arith.cmpi eq, %2, %1 : vector<16x64xi32>
    %4 = arith.extui %3 : vector<16x64xi1> to vector<16x64xi32>
    %5 = arith.sitofp %4 : vector<16x64xi32> to vector<16x64xf32>
    %6 = arith.truncf %5 : vector<16x64xf32> to vector<16x64xbf16>
    %c0_1 = arith.constant 0 : index
    %c0_2 = arith.constant 0 : index
    %c0_3 = arith.constant 0 : index
    %7 = vector.load %arg2[%c0_1, %c0_2, %c0_3] : memref<3x64x32xbf16, #tpu.memory_space<vmem>>, vector<1x64x32xbf16>
    %8 = vector.shape_cast %7 : vector<1x64x32xbf16> to vector<64x32xbf16>
    %cst = arith.constant dense<0.000000e+00> : vector<16x32xf32>
    %9 = tpu.matmul %6, %8, %cst {dimension_numbers = #tpu.dot_dimension_numbers<[1], [0], [0], [1], [0, 0, 1, 1], [], []>} : vector<16x64xbf16>, vector<64x32xbf16>, vector<16x32xf32> -> vector<16x32xf32>
    %c1 = arith.constant 1 : index
    %c0_4 = arith.constant 0 : index
    %c0_5 = arith.constant 0 : index
    %10 = vector.load %arg2[%c1, %c0_4, %c0_5] : memref<3x64x32xbf16, #tpu.memory_space<vmem>>, vector<1x64x32xbf16>
    %11 = vector.shape_cast %10 : vector<1x64x32xbf16> to vector<64x32xbf16>
    %cst_6 = arith.constant dense<0.000000e+00> : vector<16x32xf32>
    %12 = tpu.matmul %6, %11, %cst_6 {dimension_numbers = #tpu.dot_dimension_numbers<[1], [0], [0], [1], [0, 0, 1, 1], [], []>} : vector<16x64xbf16>, vector<64x32xbf16>, vector<16x32xf32> -> vector<16x32xf32>
    %13 = arith.addf %9, %12 : vector<16x32xf32>
    %c2 = arith.constant 2 : index
    %c0_7 = arith.constant 0 : index
    %c0_8 = arith.constant 0 : index
    %14 = vector.load %arg2[%c2, %c0_7, %c0_8] : memref<3x64x32xbf16, #tpu.memory_space<vmem>>, vector<1x64x32xbf16>
    %15 = vector.shape_cast %14 : vector<1x64x32xbf16> to vector<64x32xbf16>
    %cst_9 = arith.constant dense<0.000000e+00> : vector<16x32xf32>
    %16 = tpu.matmul %6, %15, %cst_9 {dimension_numbers = #tpu.dot_dimension_numbers<[1], [0], [0], [1], [0, 0, 1, 1], [], []>} : vector<16x64xbf16>, vector<64x32xbf16>, vector<16x32xf32> -> vector<16x32xf32>
    %17 = arith.addf %13, %16 : vector<16x32xf32>
    %c0_10 = arith.constant 0 : index
    %c0_11 = arith.constant 0 : index
    %18 = vector.load %arg3[%c0_10, %c0_11] : memref<16x32xf32, #tpu.memory_space<vmem>>, vector<16x32xf32>
    tpu.vector_store %arg3[%c0_10, %c0_11], %17 {strides = array<i32>} : memref<16x32xf32, #tpu.memory_space<vmem>>, vector<16x32xf32>,
    return
  }
  func.func @transform_0(%arg0: i32) -> (i32, i32) {
    %c0_i32 = arith.constant 0 : i32
    %c0_i32_0 = arith.constant 0 : i32
    return %arg0, %c0_i32 : i32, i32
  }
  func.func @transform_1(%arg0: i32) -> (i32, i32, i32) {
    %c0_i32 = arith.constant 0 : i32
    %c0_i32_0 = arith.constant 0 : i32
    %c0_i32_1 = arith.constant 0 : i32
    %c0_i32_2 = arith.constant 0 : i32
    return %c0_i32, %c0_i32_0, %c0_i32_1 : i32, i32, i32
  }
  func.func @transform_2(%arg0: i32) -> (i32, i32) {
    %c0_i32 = arith.constant 0 : i32
    %c0_i32_0 = arith.constant 0 : i32
    return %arg0, %c0_i32 : i32, i32
  }
}

</mosaic_0001>

<llo_original>
// kernel: tpu_custom_call.1
$region0: #{tpu_custom_call.1}
  #allocation0 [shape = 'u32[]', space=smem, size = 0x4, offset = 0x4, fixed_abs, tag = 'smem constant byte address 0x4 - core index']
  #allocation1 [shape = 'u32[144,128]{1,0:T(1,128)}', space=vmem, size = 0x12000, scoped, tag = 'internal scratch']
  %s0 = inlined_call_operand.vmem [shape: s32[16,1], index: 0, kind: input, shape index: {}]
  %s1 = inlined_call_operand.vmem [shape: bf16[3,64,32], index: 1, kind: input, shape index: {}]
  %s2 = inlined_call_operand.hbm [shape: f32[16,32], index: 2, kind: output, shape index: {}]
  %s3 = sld [smem:[#allocation0]]
  $region18: #{tpu_custom_call.1} parent=0
    _
  %s5 = ssub.s32 1, %s3
  %s6 = scalar_select 0, %s5, %s3
  $region1: #{tpu_custom_call.1} parent=0
    #allocation2 [shape = 'u8[8192]{0}', space=vmem, size = 0x2000, scoped, tag = 'output window, operand 0, single buffered']
    #allocation3 [shape = 's32[1]{0}', space=sflag, size = 0x4, scoped, tag = 'scoped memory for tpu_custom_call.1']
    %7 = vsyncpa [#allocation3], 0
    // Predicated region
    $region2: #{tpu_custom_call.1} parent=1 // pred_check
      _
    $region3: #{tpu_custom_call.1} parent=1 // pred_check_branch
      %9 = sbr.rel (0) target = $region5
    $region4: #{tpu_custom_call.1} parent=1 // pred_region
      _
    $region5: #{tpu_custom_call.1} parent=1 // pred_fallthru
      _
    // Predicated region
    $region6: #{tpu_custom_call.1} parent=1 // pred_check
      _
    $region7: #{tpu_custom_call.1} parent=1 // pred_check_branch
      %11 = sbr.rel (0) target = $region9
    $region8: #{tpu_custom_call.1} parent=1 // pred_region
      _
    $region9: #{tpu_custom_call.1} parent=1 // pred_fallthru
      _
    %v13 = vld [vmem:[%s0] sm:$0xff]
    %v14 = vld [vmem:[%s0 + $0x8] sm:$0xff]
    %v15 = vlaneseq
    %v16 = vand.u32 %v15, 127
    %17 = vset.pattern.permute.xlu0 0
    %18 = vperm.xlu0 %17, %v13
    %v19 = vpop.permute.xlu0 %18
    %20 = vset.pattern.permute.xlu0 0
    %21 = vperm.xlu0 %20, %v14
    %v22 = vpop.permute.xlu0 %21
    %vm23 = vcmp.eq.s32.totalorder %v19, %v16
    %vm24 = vcmp.eq.s32.totalorder %v22, %v16
    %v25 = vsel %vm23, 1, 0
    %v26 = vsel %vm24, 1, 0
    %v27 = vcvt.s32.f32 %v25
    %v28 = vcvt.s32.f32 %v26
    %v29 = vpack.c.bf16 %v28, %v27
    %v30 = vld [vmem:[%s1] sm:$0xf]
    %v31 = vld [vmem:[%s1 + $0x4] sm:$0xf]
    %v32 = vld [vmem:[%s1 + $0x8] sm:$0xf]
    %v33 = vld [vmem:[%s1 + $0xc] sm:$0xf]
    %v34 = vld [vmem:[%s1 + $0x10] sm:$0xf]
    %v35 = vld [vmem:[%s1 + $0x14] sm:$0xf]
    %v36 = vld [vmem:[%s1 + $0x18] sm:$0xf]
    %v37 = vld [vmem:[%s1 + $0x1c] sm:$0xf]
    %s38 = scalar_lea.vmem %s1, 32
    %v39 = vld [vmem:[%s38] sm:$0xf]
    %v40 = vld [vmem:[%s38 + $0x4] sm:$0xf]
    %v41 = vld [vmem:[%s38 + $0x8] sm:$0xf]
    %v42 = vld [vmem:[%s38 + $0xc] sm:$0xf]
    %v43 = vld [vmem:[%s38 + $0x10] sm:$0xf]
    %v44 = vld [vmem:[%s38 + $0x14] sm:$0xf]
    %v45 = vld [vmem:[%s38 + $0x18] sm:$0xf]
    %v46 = vld [vmem:[%s38 + $0x1c] sm:$0xf]
    %v55 = vunpack.c.l.b16 %v39
    %v56 = vunpack.c.l.b16 %v40
    %v57 = vunpack.c.l.b16 %v41
    %v58 = vunpack.c.l.b16 %v42
    %v59 = vunpack.c.l.b16 %v43
    %v60 = vunpack.c.l.b16 %v44
    %v61 = vunpack.c.l.b16 %v45
    %v62 = vunpack.c.l.b16 %v46
    %v63 = vpack.c.b16 %v56, %v55
    %v64 = vpack.c.b16 %v58, %v57
    %v65 = vpack.c.b16 %v60, %v59
    %v66 = vpack.c.b16 %v62, %v61
    %vm71 = vcmask 523264
    %v73 = vsel %vm71, %v29, 0
    %75 = vmatprep.subr.bf16.mxu0 0
    %76 = vmatpush1.bf16.msra.mxu0 %v63
    %77 = vmatprep.subr.bf16.mxu0 0
    %78 = vmatpush1.bf16.msra.mxu0 %v64
    %79 = vmatprep.subr.bf16.mxu0 0
    %80 = vmatpush1.bf16.msra.mxu0 %v65
    %81 = vmatprep.subr.bf16.mxu0 0
    %82 = vmatpush1.bf16.msra.mxu0 %v66
    %83 = vmatprep.subr.bf16.mxu0 0
    %84 = vmatpush1.bf16.msra.mxu0 0
    %85 = vmatprep.subr.bf16.mxu0 0
    %86 = vmatpush1.bf16.msra.mxu0 0
    %87 = vmatprep.subr.bf16.mxu0 0
    %88 = vmatpush1.bf16.msra.mxu0 0
    %89 = vmatprep.subr.bf16.mxu0 0
    %90 = vmatpush1.bf16.msra.mxu0 0
    %91 = vmatprep.subr.bf16.mxu0 0
    %92 = vmatpush1.bf16.msra.mxu0 0
    %93 = vmatprep.subr.bf16.mxu0 0
    %94 = vmatpush1.bf16.msra.mxu0 0
    %95 = vmatprep.subr.bf16.mxu0 0
    %96 = vmatpush1.bf16.msra.mxu0 0
    %97 = vmatprep.subr.bf16.mxu0 0
    %98 = vmatpush1.bf16.msra.mxu0 0
    %99 = vmatprep.subr.bf16.mxu0 0
    %100 = vmatpush1.bf16.msra.mxu0 0
    %101 = vmatprep.subr.bf16.mxu0 0
    %102 = vmatpush1.bf16.msra.mxu0 0
    %103 = vmatprep.subr.bf16.mxu0 0
    %104 = vmatpush1.bf16.msra.mxu0 0
    %105 = vmatprep.subr.bf16.mxu0 0
    %106 = vmatpush1.bf16.msra.mxu0 0
    %107 = vmatprep.mubr.bf16.mxu0 0
    %108 = vmatmul.mubr.bf16.gmra.mrb[0].mxu0 %v73
    %v109 = vpop.f32.mrb[0].mxu0
    %v110 = vadd.f32 0.0, %v109
    %v111 = vpop.f32.mrb[0].mxu0
    %v112 = vpop.f32.mrb[0].mxu0
    %v113 = vadd.f32 0.0, %v112
    %v114 = vpop.f32.mrb[0].mxu0
    %115 = vdwg.mxu0
    %v124 = vunpack.c.l.b16 %v30
    %v125 = vunpack.c.l.b16 %v31
    %v126 = vunpack.c.l.b16 %v32
    %v127 = vunpack.c.l.b16 %v33
    %v128 = vunpack.c.l.b16 %v34
    %v129 = vunpack.c.l.b16 %v35
    %v130 = vunpack.c.l.b16 %v36
    %v131 = vunpack.c.l.b16 %v37
    %v132 = vpack.c.b16 %v125, %v124
    %v133 = vpack.c.b16 %v127, %v126
    %v134 = vpack.c.b16 %v129, %v128
    %v135 = vpack.c.b16 %v131, %v130
    %140 = vmatprep.subr.bf16.mxu0 0
    %141 = vmatpush1.bf16.msra.mxu0 %v132
    %142 = vmatprep.subr.bf16.mxu0 0
    %143 = vmatpush1.bf16.msra.mxu0 %v133
    %144 = vmatprep.subr.bf16.mxu0 0
    %145 = vmatpush1.bf16.msra.mxu0 %v134
    %146 = vmatprep.subr.bf16.mxu0 0
    %147 = vmatpush1.bf16.msra.mxu0 %v135
    %148 = vmatprep.subr.bf16.mxu0 0
    %149 = vmatpush1.bf16.msra.mxu0 0
    %150 = vmatprep.subr.bf16.mxu0 0
    %151 = vmatpush1.bf16.msra.mxu0 0
    %152 = vmatprep.subr.bf16.mxu0 0
    %153 = vmatpush1.bf16.msra.mxu0 0
    %154 = vmatprep.subr.bf16.mxu0 0
    %155 = vmatpush1.bf16.msra.mxu0 0
    %156 = vmatprep.subr.bf16.mxu0 0
    %157 = vmatpush1.bf16.msra.mxu0 0
    %158 = vmatprep.subr.bf16.mxu0 0
    %159 = vmatpush1.bf16.msra.mxu0 0
    %160 = vmatprep.subr.bf16.mxu0 0
    %161 = vmatpush1.bf16.msra.mxu0 0
    %162 = vmatprep.subr.bf16.mxu0 0
    %163 = vmatpush1.bf16.msra.mxu0 0
    %164 = vmatprep.subr.bf16.mxu0 0
    %165 = vmatpush1.bf16.msra.mxu0 0
    %166 = vmatprep.subr.bf16.mxu0 0
    %167 = vmatpush1.bf16.msra.mxu0 0
    %168 = vmatprep.subr.bf16.mxu0 0
    %169 = vmatpush1.bf16.msra.mxu0 0
    %170 = vmatprep.subr.bf16.mxu0 0
    %171 = vmatpush1.bf16.msra.mxu0 0
    %172 = vmatprep.mubr.bf16.mxu0 0
    %173 = vmatmul.mubr.bf16.gmra.mrb[0].mxu0 %v73
    %v174 = vpop.f32.mrb[0].mxu0
    %v175 = vadd.f32 %v110, %v174
    %v176 = vpop.f32.mrb[0].mxu0
    %v177 = vpop.f32.mrb[0].mxu0
    %v178 = vadd.f32 %v113, %v177
    %v179 = vpop.f32.mrb[0].mxu0
    %180 = vdwg.mxu0
    %s181 = scalar_lea.vmem %s1, 64
    %v182 = vld [vmem:[%s181] sm:$0xf]
    %v183 = vld [vmem:[%s181 + $0x4] sm:$0xf]
    %v184 = vld [vmem:[%s181 + $0x8] sm:$0xf]
    %v185 = vld [vmem:[%s181 + $0xc] sm:$0xf]
    %v186 = vld [vmem:[%s181 + $0x10] sm:$0xf]
    %v187 = vld [vmem:[%s181 + $0x14] sm:$0xf]
    %v188 = vld [vmem:[%s181 + $0x18] sm:$0xf]
    %v189 = vld [vmem:[%s181 + $0x1c] sm:$0xf]
    %v198 = vunpack.c.l.b16 %v182
    %v199 = vunpack.c.l.b16 %v183
    %v200 = vunpack.c.l.b16 %v184
    %v201 = vunpack.c.l.b16 %v185
    %v202 = vunpack.c.l.b16 %v186
    %v203 = vunpack.c.l.b16 %v187
    %v204 = vunpack.c.l.b16 %v188
    %v205 = vunpack.c.l.b16 %v189
    %v206 = vpack.c.b16 %v199, %v198
    %v207 = vpack.c.b16 %v201, %v200
    %v208 = vpack.c.b16 %v203, %v202
    %v209 = vpack.c.b16 %v205, %v204
    %214 = vmatprep.subr.bf16.mxu0 0
    %215 = vmatpush1.bf16.msra.mxu0 %v206
    %216 = vmatprep.subr.bf16.mxu0 0
    %217 = vmatpush1.bf16.msra.mxu0 %v207
    %218 = vmatprep.subr.bf16.mxu0 0
    %219 = vmatpush1.bf16.msra.mxu0 %v208
    %220 = vmatprep.subr.bf16.mxu0 0
    %221 = vmatpush1.bf16.msra.mxu0 %v209
    %222 = vmatprep.subr.bf16.mxu0 0
    %223 = vmatpush1.bf16.msra.mxu0 0
    %224 = vmatprep.subr.bf16.mxu0 0
    %225 = vmatpush1.bf16.msra.mxu0 0
    %226 = vmatprep.subr.bf16.mxu0 0
    %227 = vmatpush1.bf16.msra.mxu0 0
    %228 = vmatprep.subr.bf16.mxu0 0
    %229 = vmatpush1.bf16.msra.mxu0 0
    %230 = vmatprep.subr.bf16.mxu0 0
    %231 = vmatpush1.bf16.msra.mxu0 0
    %232 = vmatprep.subr.bf16.mxu0 0
    %233 = vmatpush1.bf16.msra.mxu0 0
    %234 = vmatprep.subr.bf16.mxu0 0
    %235 = vmatpush1.bf16.msra.mxu0 0
    %236 = vmatprep.subr.bf16.mxu0 0
    %237 = vmatpush1.bf16.msra.mxu0 0
    %238 = vmatprep.subr.bf16.mxu0 0
    %239 = vmatpush1.bf16.msra.mxu0 0
    %240 = vmatprep.subr.bf16.mxu0 0
    %241 = vmatpush1.bf16.msra.mxu0 0
    %242 = vmatprep.subr.bf16.mxu0 0
    %243 = vmatpush1.bf16.msra.mxu0 0
    %244 = vmatprep.subr.bf16.mxu0 0
    %245 = vmatpush1.bf16.msra.mxu0 0
    %246 = vmatprep.mubr.bf16.mxu0 0
    %247 = vmatmul.mubr.bf16.gmra.mrb[0].mxu0 %v73
    %v248 = vpop.f32.mrb[0].mxu0
    %v249 = vadd.f32 0.0, %v248
    %v250 = vpop.f32.mrb[0].mxu0
    %v251 = vpop.f32.mrb[0].mxu0
    %v252 = vadd.f32 0.0, %v251
    %v253 = vpop.f32.mrb[0].mxu0
    %254 = vdwg.mxu0
    %v255 = vadd.f32 %v175, %v249
    %v256 = vadd.f32 %v178, %v252
    %vm257 = vcmask 261120
    %258 = vst.msk [vmem:[#allocation2] sm:$0xff] %vm257, %v255
    %259 = vst.msk [vmem:[#allocation2 + $0x8] sm:$0xff] %vm257, %v256
    // Predicated region
    $region10: #{tpu_custom_call.1} parent=1 // pred_check
      _
    $region11: #{tpu_custom_call.1} parent=1 // pred_check_branch
      %261 = sbr.rel (0) target = $region13
    $region12: #{tpu_custom_call.1} parent=1 // pred_region
      %s263 = ssub.s32 256, 256
      %264 = vsyncadd [#allocation3], %s263
      %s265 = sshll.u32 [#allocation2], 4
      %s266 = int_to_ptr.vmem [resolvable:$true] %s265
      %271 = dma.vmem_to_hbm [thread:$0]  %s266, 256, %s2, [#allocation3], 128, 128, 8
    $region13: #{tpu_custom_call.1} parent=1 // pred_fallthru
      _
    // Predicated region
    $region14: #{tpu_custom_call.1} parent=1 // pred_check
      _
    $region15: #{tpu_custom_call.1} parent=1 // pred_check_branch
      %273 = sbr.rel (0) target = $region17
    $region16: #{tpu_custom_call.1} parent=1 // pred_region
      %274 = dma.done [#allocation3], 256
    $region17: #{tpu_custom_call.1} parent=1 // pred_fallthru
      _
    %275 = vsyncpa [#allocation3], 1

</llo_original>
